<compile_context>
chip_gen: v6e
topology: v6e:2x2x1
jax: 0.10.0
libtpu: 0.0.40
codegen_flags: <defaults>
</compile_context>

<pallas_src>
import jax
import jax.numpy as jnp
import numpy as np
from jax.experimental import pallas as pl
from jax.experimental.pallas import tpu as pltpu


def _attn_head_kernel(x_ref, w1_ref, b1_ref, w2_ref, wh_ref, bh_ref, raw_ref):
    """One batch tile (bB batches) per grid step.

    x_ref : (bB, T, C) bf16   F-mean'd backbone features, C on the lane axis
    w1_ref: (C, H) bf16       b1_ref: (1, H) f32
    w2_ref: (1, 1, H) f32     (second attention linear, N=1; bias dropped)
    wh_ref: (C, NC) f32       bh_ref: (1, NC) f32
    raw_ref: (bB, NC) f32     raw logits
    """
    bB, T, C = x_ref.shape
    H = w1_ref.shape[1]

    x = x_ref[...]                                     # (bB, T, C) bf16
    xm = x.reshape(bB * T, C)                          # view: T % 8 == 0, C % 128 == 0

    # attention MLP stage 1: Linear(C, H) -> ReLU  (bf16 MXU, f32 accumulate)
    h = jnp.dot(xm, w1_ref[...], preferred_element_type=jnp.float32)
    h = jnp.maximum(h + b1_ref[...], 0.0)              # (bB*T, H) f32
    h3 = h.reshape(bB, T, H)                           # view: T % 8 == 0

    # attention MLP stage 2: Linear(H, 1) as VPU multiply + lane reduce.
    # The (1,1) bias is constant over T and cancels in the softmax -> dropped.
    a = jnp.sum(h3 * w2_ref[...], axis=-1, keepdims=True)        # (bB, T, 1) f32

    # softmax over time (torch dim=1); exact reciprocal (off the critical path)
    m = jnp.max(a, axis=1, keepdims=True)
    p = jnp.exp(a - m)
    attn = p * pl.reciprocal(jnp.sum(p, axis=1, keepdims=True))   # (bB, T, 1)

    # attention-weighted temporal pooling in f32
    pooled = jnp.sum(x.astype(jnp.float32) * attn, axis=1)        # (bB, C)

    # classification head (tiny matmul; kept f32 for logit accuracy)
    raw_ref[...] = (jnp.dot(pooled, wh_ref[...],
                            preferred_element_type=jnp.float32) + bh_ref[...])


def _pick_batch_block(batch, t, target_m=256):
    """bB so that M = bB*T ~ target MXU tile; bB a multiple of 8 (sublane tile)."""
    bb = -(-target_m // max(t, 1))
    bb = max(8, ((bb + 7) // 8) * 8)
    return min(bb, ((batch + 7) // 8) * 8)


def _vmem_limit_bytes(bB, t, c, h, nc):
    feat = 2 * bB * t * c * 2                    # double-buffered bf16 feature blocks
    acts = 2 * bB * t * h * 4                    # f32 hidden + softmax intermediates
    weights = c * h * 2 + 2 * h * 4 + c * nc * 4 + nc * 4
    out = 2 * bB * max(nc, 128) * 4
    budget = feat + acts + weights + out
    # generous headroom, floored at the smallest default scoped limit (v5e 16 MiB)
    # and capped well under v7x's 64 MiB physical VMEM.
    return int(min(max(2 * budget, 16 << 20), 48 << 20))


def net_attention_head(feat, params, *, batch_block=None):
    """feat: (B, C, T, F) float32 backbone features (PyTorch layout).

    Returns (sigmoid(logits), logits), each (B, num_classes).
    """
    w1, b1, w2, b2, wh, bh = params
    del b2  # constant over the softmax axis -> mathematically a no-op
    B, C, T, F = feat.shape
    H = w1.shape[1]
    NC = wh.shape[1]

    # F-mean BEFORE the transpose (cheap lane reduce on the (B,C,T,F) layout),
    # then put the channel dim C on the 128-lane axis: (B, T, C).
    xm = jnp.mean(feat, axis=3)                      # (B, C, T)  f32
    x_btc = jnp.transpose(xm, (0, 2, 1))             # (B, T, C)
    x_btc = x_btc.astype(jnp.bfloat16)               # halve kernel input DMA bytes

    bB = batch_block or _pick_batch_block(B, T)
    b_pad = -(-B // bB) * bB
    if b_pad != B:
        x_btc = jnp.pad(x_btc, ((0, b_pad - B), (0, 0), (0, 0)))

    w1_bf = w1.astype(jnp.bfloat16)                               # (C, H)
    w2_row = jnp.reshape(jnp.transpose(w2, (1, 0)), (1, 1, H))    # (1, 1, H) f32

    raw = pl.pallas_call(
        _attn_head_kernel,
        out_shape=jax.ShapeDtypeStruct((b_pad, NC), jnp.float32),
        grid=(b_pad // bB,),
        in_specs=[
            # features: tiled over the batch grid axis
            pl.BlockSpec((bB, T, C), lambda i: (i, 0, 0)),
            # weights/biases: constant index_map -> resident across the grid
            pl.BlockSpec((C, H), lambda i: (0, 0)),       # attention W1 (bf16)
            pl.BlockSpec((1, H), lambda i: (0, 0)),       # attention b1
            pl.BlockSpec((1, 1, H), lambda i: (0, 0, 0)),  # attention W2 row
            pl.BlockSpec((C, NC), lambda i: (0, 0)),      # head W
            pl.BlockSpec((1, NC), lambda i: (0, 0)),      # head b
        ],
        out_specs=pl.BlockSpec((bB, NC), lambda i: (i, 0)),
        compiler_params=pltpu.CompilerParams(
            dimension_semantics=("parallel",),            # megacore split on v7x
            vmem_limit_bytes=_vmem_limit_bytes(bB, T, C, H, NC)),
    )(x_btc, w1_bf, b1, w2_row, wh, bh)

    raw = raw[:B]
    # Sigmoid in the wrapper: only raw logits leave the kernel (half the DMA).
    return jax.nn.sigmoid(raw), raw


def net_forward(data, params, *, batch_block=None):
    """Mirrors Net.forward's eval-path return dict (from backbone features)."""
    sig, raw = net_attention_head(data["features"], params, batch_block=batch_block)
    return {"logits": sig, "logits_raw": raw,
            "weight": data["weight"], "target": data["target"]}


def _reference(feat, params):
    w1, b1, w2, b2, wh, bh = params
    xm = feat.mean(axis=3)                     # (B, C, T)
    xt = jnp.transpose(xm, (0, 2, 1))          # (B, T, C)
    h = jax.nn.relu(xt @ w1 + b1)              # (B, T, H)
    a = h @ w2 + b2                            # (B, T, 1)
    attn = jax.nn.softmax(a, axis=1)
    x2 = (xt * attn).sum(axis=1)               # (B, C)
    logits = x2 @ wh + bh                      # (B, NC)
    return jax.nn.sigmoid(logits), logits


def _init_linear(key, fan_in, fan_out):
    # PyTorch nn.Linear default init: U(-1/sqrt(fan_in), 1/sqrt(fan_in))
    kw, kb = jax.random.split(key)
    bound = 1.0 / np.sqrt(fan_in)
    w = jax.random.uniform(kw, (fan_in, fan_out), jnp.float32, -bound, bound)
    b = jax.random.uniform(kb, (1, fan_out), jnp.float32, -bound, bound)
    return w, b


if __name__ == "__main__":
    # Small shapes consistent with the module's post-backbone tensors
    # (C = backbone_out channels on the lane axis, T time frames, F mel bins).
    B, C, T, F = 16, 128, 16, 8
    HIDDEN = 512                      # attention hidden size (fixed in module)
    N_CLASSES = 8

    key = jax.random.PRNGKey(0)
    k_feat, k_a1, k_a2, k_head, k_tgt = jax.random.split(key, 5)

    feat = jax.random.normal(k_feat, (B, C, T, F), jnp.float32)
    w1, b1 = _init_linear(k_a1, C, HIDDEN)       # attention[0]: Linear(C, 512)
    w2, b2 = _init_linear(k_a2, HIDDEN, 1)       # attention[2]: Linear(512, 1)
    wh, bh = _init_linear(k_head, C, N_CLASSES)  # head: Linear(C, n_classes)
    params = (w1, b1, w2, b2, wh, bh)

    data = {
        "features": feat,
        "target": (jax.random.uniform(k_tgt, (B, N_CLASSES)) > 0.5).astype(jnp.float32),
        "weight": jnp.ones((B,), jnp.float32),
    }

    # batch_block=8 -> grid=(2,): exercises the batch tiling / pipelining path.
    out = net_forward(data, params, batch_block=8)
    jax.block_until_ready(out)

    ref_sig, ref_raw = _reference(feat, params)
    # tolerance covers the bf16 feature/W1 cast (f32 accumulation, f32 softmax)
    assert np.allclose(np.asarray(out["logits"]), np.asarray(ref_sig),
                       rtol=5e-2, atol=2e-2)
    assert np.allclose(np.asarray(out["logits_raw"]), np.asarray(ref_raw),
                       rtol=5e-2, atol=2e-2)

    print("KERNEL_OK")
</pallas_src>

<mosaic_0001>
module attributes {stable_mosaic.version = 11 : i64} {
  func.func @_attn_head_kernel(%arg0: i32, %arg1: memref<8x16x128xbf16, #tpu.memory_space<vmem>>, %arg2: memref<128x512xbf16, #tpu.memory_space<vmem>>, %arg3: memref<1x512xf32, #tpu.memory_space<vmem>>, %arg4: memref<1x1x512xf32, #tpu.memory_space<vmem>>, %arg5: memref<128x8xf32, #tpu.memory_space<vmem>>, %arg6: memref<1x8xf32, #tpu.memory_space<vmem>>, %arg7: memref<8x8xf32, #tpu.memory_space<vmem>>) attributes {dimension_semantics = [#tpu.dimension_semantics<parallel>], iteration_bounds = array<i64: 2>, scalar_prefetch = 0 : i64, scratch_operands = 0 : i64, tpu.core_type = #tpu.core_type<tc>, window_params = [{transform_indices = @transform_0, window_bounds = array<i64: 8, 16, 128>}, {pipeline_mode = #tpu.pipeline_mode<synchronous>, transform_indices = @transform_1, window_bounds = array<i64: 128, 512>}, {pipeline_mode = #tpu.pipeline_mode<synchronous>, transform_indices = @transform_2, window_bounds = array<i64: 1, 512>}, {pipeline_mode = #tpu.pipeline_mode<synchronous>, transform_indices = @transform_3, window_bounds = array<i64: 1, 1, 512>}, {pipeline_mode = #tpu.pipeline_mode<synchronous>, transform_indices = @transform_4, window_bounds = array<i64: 128, 8>}, {pipeline_mode = #tpu.pipeline_mode<synchronous>, transform_indices = @transform_5, window_bounds = array<i64: 1, 8>}, {transform_indices = @transform_6, window_bounds = array<i64: 8, 8>}]} {
    %c0 = arith.constant 0 : index
    %c0_0 = arith.constant 0 : index
    %c0_1 = arith.constant 0 : index
    %0 = vector.load %arg1[%c0, %c0_0, %c0_1] : memref<8x16x128xbf16, #tpu.memory_space<vmem>>, vector<8x16x128xbf16>
    %1 = vector.shape_cast %0 : vector<8x16x128xbf16> to vector<128x128xbf16>
    %c0_2 = arith.constant 0 : index
    %c0_3 = arith.constant 0 : index
    %2 = vector.load %arg2[%c0_2, %c0_3] : memref<128x512xbf16, #tpu.memory_space<vmem>>, vector<128x512xbf16>
    %cst = arith.constant dense<0.000000e+00> : vector<128x512xf32>
    %3 = tpu.matmul %1, %2, %cst {dimension_numbers = #tpu.dot_dimension_numbers<[1], [0], [0], [1], [0, 0, 1, 1], [], []>} : vector<128x128xbf16>, vector<128x512xbf16>, vector<128x512xf32> -> vector<128x512xf32>
    %c0_4 = arith.constant 0 : index
    %c0_5 = arith.constant 0 : index
    %4 = vector.load %arg3[%c0_4, %c0_5] : memref<1x512xf32, #tpu.memory_space<vmem>>, vector<1x512xf32>
    %5 = vector.broadcast %4 : vector<1x512xf32> to vector<128x512xf32>
    %6 = arith.addf %3, %5 : vector<128x512xf32>
    %cst_6 = arith.constant 0.000000e+00 : f32
    %7 = vector.broadcast %cst_6 : f32 to vector<128x512xf32>
    %8 = arith.maximumf %6, %7 : vector<128x512xf32>
    %9 = vector.shape_cast %8 : vector<128x512xf32> to vector<8x16x512xf32>
    %c0_7 = arith.constant 0 : index
    %c0_8 = arith.constant 0 : index
    %c0_9 = arith.constant 0 : index
    %10 = vector.load %arg4[%c0_7, %c0_8, %c0_9] : memref<1x1x512xf32, #tpu.memory_space<vmem>>, vector<1x1x512xf32>
    %11 = vector.broadcast %10 : vector<1x1x512xf32> to vector<8x16x512xf32>
    %12 = arith.mulf %9, %11 : vector<8x16x512xf32>
    %cst_10 = arith.constant dense<0.000000e+00> : vector<8x16xf32>
    %13 = vector.multi_reduction <add>, %12, %cst_10 [2] : vector<8x16x512xf32> to vector<8x16xf32>
    %14 = vector.shape_cast %13 : vector<8x16xf32> to vector<8x16x1xf32>
    %cst_11 = arith.constant dense<0xFF800000> : vector<8x1xf32>
    %15 = vector.multi_reduction <maximumf>, %14, %cst_11 [1] : vector<8x16x1xf32> to vector<8x1xf32>
    %16 = vector.shape_cast %15 : vector<8x1xf32> to vector<8x1x1xf32>
    %17 = vector.broadcast %16 : vector<8x1x1xf32> to vector<8x16x1xf32>
    %18 = arith.subf %14, %17 : vector<8x16x1xf32>
    %19 = math.exp %18 : vector<8x16x1xf32>
    %cst_12 = arith.constant dense<0.000000e+00> : vector<8x1xf32>
    %20 = vector.multi_reduction <add>, %19, %cst_12 [1] : vector<8x16x1xf32> to vector<8x1xf32>
    %21 = vector.shape_cast %20 : vector<8x1xf32> to vector<8x1x1xf32>
    %22 = tpu.reciprocal %21 : vector<8x1x1xf32> -> vector<8x1x1xf32>
    %23 = vector.broadcast %22 : vector<8x1x1xf32> to vector<8x16x1xf32>
    %24 = arith.mulf %19, %23 : vector<8x16x1xf32>
    %25 = arith.extf %0 : vector<8x16x128xbf16> to vector<8x16x128xf32>
    %26 = vector.broadcast %24 : vector<8x16x1xf32> to vector<8x16x128xf32>
    %27 = arith.mulf %25, %26 : vector<8x16x128xf32>
    %cst_13 = arith.constant dense<0.000000e+00> : vector<8x128xf32>
    %28 = vector.multi_reduction <add>, %27, %cst_13 [1] : vector<8x16x128xf32> to vector<8x128xf32>
    %c0_14 = arith.constant 0 : index
    %c0_15 = arith.constant 0 : index
    %29 = vector.load %arg5[%c0_14, %c0_15] : memref<128x8xf32, #tpu.memory_space<vmem>>, vector<128x8xf32>
    %cst_16 = arith.constant dense<0.000000e+00> : vector<8x8xf32>
    %30 = tpu.matmul %28, %29, %cst_16 {dimension_numbers = #tpu.dot_dimension_numbers<[1], [0], [0], [1], [0, 0, 1, 1], [], []>} : vector<8x128xf32>, vector<128x8xf32>, vector<8x8xf32> -> vector<8x8xf32>
    %c0_17 = arith.constant 0 : index
    %c0_18 = arith.constant 0 : index
    %31 = vector.load %arg6[%c0_17, %c0_18] : memref<1x8xf32, #tpu.memory_space<vmem>>, vector<1x8xf32>
    %32 = vector.broadcast %31 : vector<1x8xf32> to vector<8x8xf32>
    %33 = arith.addf %30, %32 : vector<8x8xf32>
    %c0_19 = arith.constant 0 : index
    %c0_20 = arith.constant 0 : index
    %34 = vector.load %arg7[%c0_19, %c0_20] : memref<8x8xf32, #tpu.memory_space<vmem>>, vector<8x8xf32>
    tpu.vector_store %arg7[%c0_19, %c0_20], %33 {strides = array<i32>} : memref<8x8xf32, #tpu.memory_space<vmem>>, vector<8x8xf32>,
    return
  }
  func.func @transform_0(%arg0: i32) -> (i32, i32, i32) {
    %c0_i32 = arith.constant 0 : i32
    %c0_i32_0 = arith.constant 0 : i32
    %c0_i32_1 = arith.constant 0 : i32
    return %arg0, %c0_i32, %c0_i32_0 : i32, i32, i32
  }
  func.func @transform_1(%arg0: i32) -> (i32, i32) {
    %c0_i32 = arith.constant 0 : i32
    %c0_i32_0 = arith.constant 0 : i32
    %c0_i32_1 = arith.constant 0 : i32
    return %c0_i32, %c0_i32_0 : i32, i32
  }
  func.func @transform_2(%arg0: i32) -> (i32, i32) {
    %c0_i32 = arith.constant 0 : i32
    %c0_i32_0 = arith.constant 0 : i32
    %c0_i32_1 = arith.constant 0 : i32
    return %c0_i32, %c0_i32_0 : i32, i32
  }
  func.func @transform_3(%arg0: i32) -> (i32, i32, i32) {
    %c0_i32 = arith.constant 0 : i32
    %c0_i32_0 = arith.constant 0 : i32
    %c0_i32_1 = arith.constant 0 : i32
    %c0_i32_2 = arith.constant 0 : i32
    return %c0_i32, %c0_i32_0, %c0_i32_1 : i32, i32, i32
  }
  func.func @transform_4(%arg0: i32) -> (i32, i32) {
    %c0_i32 = arith.constant 0 : i32
    %c0_i32_0 = arith.constant 0 : i32
    %c0_i32_1 = arith.constant 0 : i32
    return %c0_i32, %c0_i32_0 : i32, i32
  }
  func.func @transform_5(%arg0: i32) -> (i32, i32) {
    %c0_i32 = arith.constant 0 : i32
    %c0_i32_0 = arith.constant 0 : i32
    %c0_i32_1 = arith.constant 0 : i32
    return %c0_i32, %c0_i32_0 : i32, i32
  }
  func.func @transform_6(%arg0: i32) -> (i32, i32) {
    %c0_i32 = arith.constant 0 : i32
    %c0_i32_0 = arith.constant 0 : i32
    return %arg0, %c0_i32 : i32, i32
  }
}

</mosaic_0001>

<llo_original>
// kernel: tpu_custom_call.1
$region0: #{tpu_custom_call.1}
  #allocation0 [shape = 'u32[]', space=smem, size = 0x4, offset = 0x4, fixed_abs, tag = 'smem constant byte address 0x4 - core index']
  #allocation1 [shape = 'u32[144,128]{1,0:T(1,128)}', space=vmem, size = 0x12000, scoped, tag = 'internal scratch']
  %s0 = inlined_call_operand.vmem [shape: bf16[16,16,128], index: 0, kind: input, shape index: {}]
  %s1 = inlined_call_operand.hbm [shape: bf16[128,512], index: 1, kind: input, shape index: {}]
  %s2 = inlined_call_operand.vmem [shape: f32[1,512], index: 2, kind: input, shape index: {}]
  %s3 = inlined_call_operand.vmem [shape: f32[1,1,512], index: 3, kind: input, shape index: {}]
  %s4 = inlined_call_operand.vmem [shape: f32[128,8], index: 4, kind: input, shape index: {}]
  %s5 = inlined_call_operand.vmem [shape: f32[1,8], index: 5, kind: input, shape index: {}]
  %s6 = inlined_call_operand.vmem [shape: f32[16,8], index: 6, kind: output, shape index: {}]
  %s7 = sld [smem:[#allocation0]]
  $region61: #{tpu_custom_call.1} parent=0
    _
  %s9 = ssub.s32 1, %s7
  %s10 = scalar_select 0, %s9, %s7
  $region1: #{tpu_custom_call.1} parent=0
    #allocation2 [shape = 'u8[131072]{0}', space=vmem, size = 0x20000, scoped, tag = 'input window, operand 1, single buffered']
    #allocation3 [shape = 's32[2]{0}', space=sflag, size = 0x8, scoped, tag = 'scoped memory for tpu_custom_call.1']
    %11 = vsyncpa [#allocation3], 0
    loop: start=0, step=1, limit=4
    $region2: #{tpu_custom_call.1} parent=1 // loop_pre_header
      _
    $region3: #{tpu_custom_call.1} parent=1 // loop_header
      %s13 = sphi 0, %s17
      %p14 = scmp.ge.s32.totalorder %s13, 4
      %s23 = sphi 0, %s25
      %s26 = sphi 0, %s23
      %s27 = sphi 0, %s26
      %s43 = sphi 0, %s27
      %s47 = sphi 0, %s47
      %s49 = sphi 0, %s47
      %s50 = sphi 0, %s49
      %s64 = sphi 0, %s50
      %s68 = sphi 0, %s68
      %s70 = sphi 0, %s68
      %s71 = sphi 0, %s70
      %s85 = sphi 0, %s71
      %s89 = sphi 0, %s89
      %s91 = sphi 0, %s89
      %s92 = sphi 0, %s91
      %s106 = sphi 0, %s92
      %s110 = sphi 0, %s110
      %s112 = sphi 0, %s110
      %s113 = sphi 0, %s112
      %s127 = sphi 0, %s113
      %s131 = sphi 0, %s131
      %s133 = sphi 0, %s131
      %s134 = sphi 0, %s133
      %s148 = sphi 0, %s134
      %s154 = sphi 0, %s156
      %s157 = sphi 0, %s154
      %s158 = sphi 0, %s157
      %s174 = sphi 0, %s158
    $region4: #{tpu_custom_call.1} parent=1 // loop_header_branch
      %16 = sbr.rel (%p14) target = $region8
    $region5: #{tpu_custom_call.1} parent=1 // loop_body
      %s18 = ssub.s32 %s13, 1
      %s19 = ssub.s32 %s13, 2
      %s20 = sadd.s32 %s13, 1
      %s21 = ssub.s32 %s13, %s20
      %p22 = scmp.eq.s32.totalorder %s21, 0
      %s24 = sadd.s32 %s23, 1
      %s25 = scalar_select %p22, %s23, %s24
      %p28 = pneg %p22
      %p29 = scmp.eq.s32.totalorder %s13, 1
      %p30 = por %p28, %p29
      %p31 = scmp.ne.s32.totalorder %s23, %s26
      %p32 = scmp.eq.s32.totalorder %s13, 0
      %p33 = por %p31, %p32
      %p34 = scmp.ne.s32.totalorder %s23, %s26
      %p35 = scmp.eq.s32.totalorder %s18, 1
      %p36 = por %p34, %p35
      %p37 = scmp.ne.s32.totalorder %s26, %s27
      %p38 = scmp.eq.s32.totalorder %s18, 0
      %p39 = por %p37, %p38
      %p40 = scmp.ne.s32.totalorder %s26, %s27
      %p41 = scmp.eq.s32.totalorder %s19, 1
      %p42 = por %p40, %p41
      %p44 = scmp.ne.s32.totalorder %s27, %s43
      %p45 = scmp.eq.s32.totalorder %s19, 0
      %p46 = por %p44, %p45
      %s48 = sadd.s32 %s47, 1
      %p51 = scmp.eq.s32.totalorder %s13, 1
      %p52 = scmp.ne.s32.totalorder %s47, %s49
      %p53 = scmp.eq.s32.totalorder %s13, 0
      %p54 = por %p52, %p53
      %p55 = scmp.ne.s32.totalorder %s47, %s49
      %p56 = scmp.eq.s32.totalorder %s18, 1
      %p57 = por %p55, %p56
      %p58 = scmp.ne.s32.totalorder %s49, %s50
      %p59 = scmp.eq.s32.totalorder %s18, 0
      %p60 = por %p58, %p59
      %p61 = scmp.ne.s32.totalorder %s49, %s50
      %p62 = scmp.eq.s32.totalorder %s19, 1
      %p63 = por %p61, %p62
      %p65 = scmp.ne.s32.totalorder %s50, %s64
      %p66 = scmp.eq.s32.totalorder %s19, 0
      %p67 = por %p65, %p66
      %s69 = sadd.s32 %s68, 1
      %p72 = scmp.eq.s32.totalorder %s13, 1
      %p73 = scmp.ne.s32.totalorder %s68, %s70
      %p74 = scmp.eq.s32.totalorder %s13, 0
      %p75 = por %p73, %p74
      %p76 = scmp.ne.s32.totalorder %s68, %s70
      %p77 = scmp.eq.s32.totalorder %s18, 1
      %p78 = por %p76, %p77
      %p79 = scmp.ne.s32.totalorder %s70, %s71
      %p80 = scmp.eq.s32.totalorder %s18, 0
      %p81 = por %p79, %p80
      %p82 = scmp.ne.s32.totalorder %s70, %s71
      %p83 = scmp.eq.s32.totalorder %s19, 1
      %p84 = por %p82, %p83
      %p86 = scmp.ne.s32.totalorder %s71, %s85
      %p87 = scmp.eq.s32.totalorder %s19, 0
      %p88 = por %p86, %p87
      %s90 = sadd.s32 %s89, 1
      %p93 = scmp.eq.s32.totalorder %s13, 1
      %p94 = scmp.ne.s32.totalorder %s89, %s91
      %p95 = scmp.eq.s32.totalorder %s13, 0
      %p96 = por %p94, %p95
      %p97 = scmp.ne.s32.totalorder %s89, %s91
      %p98 = scmp.eq.s32.totalorder %s18, 1
      %p99 = por %p97, %p98
      %p100 = scmp.ne.s32.totalorder %s91, %s92
      %p101 = scmp.eq.s32.totalorder %s18, 0
      %p102 = por %p100, %p101
      %p103 = scmp.ne.s32.totalorder %s91, %s92
      %p104 = scmp.eq.s32.totalorder %s19, 1
      %p105 = por %p103, %p104
      %p107 = scmp.ne.s32.totalorder %s92, %s106
      %p108 = scmp.eq.s32.totalorder %s19, 0
      %p109 = por %p107, %p108
      %s111 = sadd.s32 %s110, 1
      %p114 = scmp.eq.s32.totalorder %s13, 1
      %p115 = scmp.ne.s32.totalorder %s110, %s112
      %p116 = scmp.eq.s32.totalorder %s13, 0
      %p117 = por %p115, %p116
      %p118 = scmp.ne.s32.totalorder %s110, %s112
      %p119 = scmp.eq.s32.totalorder %s18, 1
      %p120 = por %p118, %p119
      %p121 = scmp.ne.s32.totalorder %s112, %s113
      %p122 = scmp.eq.s32.totalorder %s18, 0
      %p123 = por %p121, %p122
      %p124 = scmp.ne.s32.totalorder %s112, %s113
      %p125 = scmp.eq.s32.totalorder %s19, 1
      %p126 = por %p124, %p125
      %p128 = scmp.ne.s32.totalorder %s113, %s127
      %p129 = scmp.eq.s32.totalorder %s19, 0
      %p130 = por %p128, %p129
      %s132 = sadd.s32 %s131, 1
      %p135 = scmp.eq.s32.totalorder %s13, 1
      %p136 = scmp.ne.s32.totalorder %s131, %s133
      %p137 = scmp.eq.s32.totalorder %s13, 0
      %p138 = por %p136, %p137
      %p139 = scmp.ne.s32.totalorder %s131, %s133
      %p140 = scmp.eq.s32.totalorder %s18, 1
      %p141 = por %p139, %p140
      %p142 = scmp.ne.s32.totalorder %s133, %s134
      %p143 = scmp.eq.s32.totalorder %s18, 0
      %p144 = por %p142, %p143
      %p145 = scmp.ne.s32.totalorder %s133, %s134
      %p146 = scmp.eq.s32.totalorder %s19, 1
      %p147 = por %p145, %p146
      %p149 = scmp.ne.s32.totalorder %s134, %s148
      %p150 = scmp.eq.s32.totalorder %s19, 0
      %p151 = por %p149, %p150
      %s152 = ssub.s32 %s13, %s20
      %p153 = scmp.eq.s32.totalorder %s152, 0
      %s155 = sadd.s32 %s154, 1
      %s156 = scalar_select %p153, %s154, %s155
      %p159 = pneg %p153
      %p160 = scmp.eq.s32.totalorder %s13, 1
      %p161 = por %p159, %p160
      %p162 = scmp.ne.s32.totalorder %s154, %s157
      %p163 = scmp.eq.s32.totalorder %s13, 0
      %p164 = por %p162, %p163
      %p165 = scmp.ne.s32.totalorder %s154, %s157
      %p166 = scmp.eq.s32.totalorder %s18, 1
      %p167 = por %p165, %p166
      %p168 = scmp.ne.s32.totalorder %s157, %s158
      %p169 = scmp.eq.s32.totalorder %s18, 0
      %p170 = por %p168, %p169
      %p171 = scmp.ne.s32.totalorder %s157, %s158
      %p172 = scmp.eq.s32.totalorder %s19, 1
      %p173 = por %p171, %p172
      %p175 = scmp.ne.s32.totalorder %s158, %s174
      %p176 = scmp.eq.s32.totalorder %s19, 0
      %p177 = por %p175, %p176
      %p178 = scmp.le.s32.totalorder 1, %s13
      %p179 = scmp.lt.s32.totalorder %s13, 3
      %p180 = pnand %p178, %p179
      %p181 = pneg %p180
      // Predicated region
      $region9: #{tpu_custom_call.1} parent=5 // pred_check
        _
      $region10: #{tpu_custom_call.1} parent=5 // pred_check_branch
        %183 = sbr.rel (%p180) target = $region12
      $region11: #{tpu_custom_call.1} parent=5 // pred_region
        %s184 = ssub.s32 %s13, 1
        // Predicated region
        $region13: #{tpu_custom_call.1} parent=11 // pred_check
          %p185 = pneg %p60
        $region14: #{tpu_custom_call.1} parent=11 // pred_check_branch
          %187 = sbr.rel (%p185) target = $region16
        $region15: #{tpu_custom_call.1} parent=11 // pred_region
          %s189 = ssub.s32 4096, 4096
          %190 = vsyncadd [#allocation3], %s189
          %s191 = sshll.u32 [#allocation2], 4
          %s192 = int_to_ptr.vmem [resolvable:$true] %s191
          %197 = dma.hbm_to_vmem [thread:$0]  %s1, 4096, %s192, [#allocation3], 256, 256, 16
        $region16: #{tpu_custom_call.1} parent=11 // pred_fallthru
          _
        // Predicated region
        $region17: #{tpu_custom_call.1} parent=11 // pred_check
          %p198 = pneg %p81
        $region18: #{tpu_custom_call.1} parent=11 // pred_check_branch
          %200 = sbr.rel (%p198) target = $region20
        $region19: #{tpu_custom_call.1} parent=11 // pred_region
          _
        $region20: #{tpu_custom_call.1} parent=11 // pred_fallthru
          _
        // Predicated region
        $region21: #{tpu_custom_call.1} parent=11 // pred_check
          %p201 = pneg %p102
        $region22: #{tpu_custom_call.1} parent=11 // pred_check_branch
          %203 = sbr.rel (%p201) target = $region24
        $region23: #{tpu_custom_call.1} parent=11 // pred_region
          _
        $region24: #{tpu_custom_call.1} parent=11 // pred_fallthru
          _
        // Predicated region
        $region25: #{tpu_custom_call.1} parent=11 // pred_check
          %p204 = pneg %p123
        $region26: #{tpu_custom_call.1} parent=11 // pred_check_branch
          %206 = sbr.rel (%p204) target = $region28
        $region27: #{tpu_custom_call.1} parent=11 // pred_region
          _
        $region28: #{tpu_custom_call.1} parent=11 // pred_fallthru
          _
        // Predicated region
        $region29: #{tpu_custom_call.1} parent=11 // pred_check
          %p207 = pneg %p144
        $region30: #{tpu_custom_call.1} parent=11 // pred_check_branch
          %209 = sbr.rel (%p207) target = $region32
        $region31: #{tpu_custom_call.1} parent=11 // pred_region
          _
        $region32: #{tpu_custom_call.1} parent=11 // pred_fallthru
          _
      $region12: #{tpu_custom_call.1} parent=5 // pred_fallthru
        _
      %p210 = scmp.lt.s32.totalorder %s13, 2
      // Predicated region
      $region33: #{tpu_custom_call.1} parent=5 // pred_check
        %p211 = pneg %p210
      $region34: #{tpu_custom_call.1} parent=5 // pred_check_branch
        %213 = sbr.rel (%p211) target = $region36
      $region35: #{tpu_custom_call.1} parent=5 // pred_region
        // Predicated region
        $region37: #{tpu_custom_call.1} parent=35 // pred_check
          %p214 = pneg %p33
        $region38: #{tpu_custom_call.1} parent=35 // pred_check_branch
          %216 = sbr.rel (%p214) target = $region40
        $region39: #{tpu_custom_call.1} parent=35 // pred_region
          %s217 = smul.u32 8, %s13
          %p218 = scmp.lt.s32.totalorder %s217, 15
          %s219 = scalar_select %p218, %s217, 15
          %s220 = smul.addr %s219, 2
          %s221 = smul.addr %s220, 4
          %s222 = scalar_lea.vmem %s0, %s221
          %s223 = smul.u32 8, %s13
        $region40: #{tpu_custom_call.1} parent=35 // pred_fallthru
          _
      $region36: #{tpu_custom_call.1} parent=5 // pred_fallthru
        _
      %p224 = scmp.le.s32.totalorder 1, %s13
      %p225 = scmp.lt.s32.totalorder %s13, 3
      %p226 = pnand %p224, %p225
      %p227 = pneg %p226
      // Predicated region
      $region41: #{tpu_custom_call.1} parent=5 // pred_check
        _
      $region42: #{tpu_custom_call.1} parent=5 // pred_check_branch
        %229 = sbr.rel (%p226) target = $region44
      $region43: #{tpu_custom_call.1} parent=5 // pred_region
        %s230 = ssub.s32 %s13, 1
        // Predicated region
        $region45: #{tpu_custom_call.1} parent=43 // pred_check
          %p231 = pneg %p60
        $region46: #{tpu_custom_call.1} parent=43 // pred_check_branch
          %233 = sbr.rel (%p231) target = $region48
        $region47: #{tpu_custom_call.1} parent=43 // pred_region
          %234 = dma.done [#allocation3], 4096
        $region48: #{tpu_custom_call.1} parent=43 // pred_fallthru
          _
        %s235 = smul.u32 8, %s18
        %p236 = scmp.lt.s32.totalorder %s235, 15
        %s237 = scalar_select %p236, %s235, 15
        %s238 = smul.addr %s237, 2
        %s239 = smul.addr %s238, 4
        %s240 = scalar_lea.vmem %s0, %s239
        %p241 = pneg %p39
        %p242 = pneg %p36
        %p243 = pneg %p60
        %p244 = pneg %p57
        %p245 = pneg %p81
        %p246 = pneg %p78
        %p247 = pneg %p102
        %p248 = pneg %p99
        %p249 = pneg %p123
        %p250 = pneg %p120
        %p251 = pneg %p144
        %p252 = pneg %p141
        %p253 = pneg %p170
        %p254 = pneg %p167
        %p255 = scmp.lt.s32.totalorder %s18, 1
        %s256 = scalar_select %p255, %s18, 1
        %s257 = smul.addr %s256, 8
        %s258 = scalar_lea.vmem %s6, %s257
        %s259 = smul.u32 8, %s18
        %p260 = scmp.lt.s32.totalorder %s259, 15
        %s261 = scalar_select %p260, %s259, 15
        %s262 = smul.addr %s261, 2
        %s263 = smul.addr %s262, 4
        %s264 = scalar_lea.vmem %s0, %s263
        %s265 = smul.u32 8, %s18
        %p266 = scmp.lt.s32.totalorder %s18, 1
        %s267 = scalar_select %p266, %s18, 1
        %s268 = smul.addr %s267, 8
        %s269 = scalar_lea.vmem %s6, %s268
        %v271 = vld [vmem:[%s264] sm:$0xf]
        %v272 = vld [vmem:[%s264 + $0x4] sm:$0xf]
        %v273 = vld [vmem:[%s264 + $0x8] sm:$0xf]
        %v274 = vld [vmem:[%s264 + $0xc] sm:$0xf]
        %v275 = vld [vmem:[%s264 + $0x10] sm:$0xf]
        %v276 = vld [vmem:[%s264 + $0x14] sm:$0xf]
        %v277 = vld [vmem:[%s264 + $0x18] sm:$0xf]
        %v278 = vld [vmem:[%s264 + $0x1c] sm:$0xf]
        %v279 = vld [vmem:[%s264 + $0x20] sm:$0xf]
        %v280 = vld [vmem:[%s264 + $0x24] sm:$0xf]
        %v281 = vld [vmem:[%s264 + $0x28] sm:$0xf]
        %v282 = vld [vmem:[%s264 + $0x2c] sm:$0xf]
        %v283 = vld [vmem:[%s264 + $0x30] sm:$0xf]
        %v284 = vld [vmem:[%s264 + $0x34] sm:$0xf]
        %v285 = vld [vmem:[%s264 + $0x38] sm:$0xf]
        %v286 = vld [vmem:[%s264 + $0x3c] sm:$0xf]
        %v287 = vld [vmem:[#allocation2] sm:$0xff]
        %v288 = vld [vmem:[#allocation2 + $0x8] sm:$0xff]
        %v289 = vld [vmem:[#allocation2 + $0x10] sm:$0xff]
        %v290 = vld [vmem:[#allocation2 + $0x18] sm:$0xff]
        %v291 = vld [vmem:[#allocation2 + $0x20] sm:$0xff]
        %v292 = vld [vmem:[#allocation2 + $0x28] sm:$0xff]
        %v293 = vld [vmem:[#allocation2 + $0x30] sm:$0xff]
        %v294 = vld [vmem:[#allocation2 + $0x38] sm:$0xff]
        %v295 = vld [vmem:[#allocation2 + $0x40] sm:$0xff]
        %v296 = vld [vmem:[#allocation2 + $0x48] sm:$0xff]
        %v297 = vld [vmem:[#allocation2 + $0x50] sm:$0xff]
        %v298 = vld [vmem:[#allocation2 + $0x58] sm:$0xff]
        %v299 = vld [vmem:[#allocation2 + $0x60] sm:$0xff]
        %v300 = vld [vmem:[#allocation2 + $0x68] sm:$0xff]
        %v301 = vld [vmem:[#allocation2 + $0x70] sm:$0xff]
        %v302 = vld [vmem:[#allocation2 + $0x78] sm:$0xff]
        %v303 = vld [vmem:[#allocation2 + $0x80] sm:$0xff]
        %v304 = vld [vmem:[#allocation2 + $0x88] sm:$0xff]
        %v305 = vld [vmem:[#allocation2 + $0x90] sm:$0xff]
        %v306 = vld [vmem:[#allocation2 + $0x98] sm:$0xff]
        %v307 = vld [vmem:[#allocation2 + $0xa0] sm:$0xff]
        %v308 = vld [vmem:[#allocation2 + $0xa8] sm:$0xff]
        %v309 = vld [vmem:[#allocation2 + $0xb0] sm:$0xff]
        %v310 = vld [vmem:[#allocation2 + $0xb8] sm:$0xff]
        %v311 = vld [vmem:[#allocation2 + $0xc0] sm:$0xff]
        %v312 = vld [vmem:[#allocation2 + $0xc8] sm:$0xff]
        %v313 = vld [vmem:[#allocation2 + $0xd0] sm:$0xff]
        %v314 = vld [vmem:[#allocation2 + $0xd8] sm:$0xff]
        %v315 = vld [vmem:[#allocation2 + $0xe0] sm:$0xff]
        %v316 = vld [vmem:[#allocation2 + $0xe8] sm:$0xff]
        %v317 = vld [vmem:[#allocation2 + $0xf0] sm:$0xff]
        %v318 = vld [vmem:[#allocation2 + $0xf8] sm:$0xff]
        %v319 = vld [vmem:[%s2] sm:$0xf]
        %v321 = vlaneseq
        %v322 = vshrl.u32 %v321, 7
        %v323 = vsub.s32 0, %v322
        %v324 = vrot.slane %v319, %v323
        %v325 = vlaneseq
        %v326 = vshrl.u32 %v325, 7
        %v327 = vsub.s32 1, %v326
        %v328 = vrot.slane %v319, %v327
        %v329 = vlaneseq
        %v330 = vshrl.u32 %v329, 7
        %v331 = vsub.s32 2, %v330
        %v332 = vrot.slane %v319, %v331
        %v333 = vlaneseq
        %v334 = vshrl.u32 %v333, 7
        %v335 = vsub.s32 3, %v334
        %v336 = vrot.slane %v319, %v335
        %v357 = vunpack.c.l.b16 %v271
        %v358 = vunpack.c.l.b16 %v272
        %v359 = vunpack.c.l.b16 %v273
        %v360 = vunpack.c.l.b16 %v274
        %v361 = vunpack.c.l.b16 %v275
        %v362 = vunpack.c.l.b16 %v276
        %v363 = vunpack.c.l.b16 %v277
        %v364 = vunpack.c.l.b16 %v278
        %v365 = vunpack.c.l.b16 %v279
        %v366 = vunpack.c.l.b16 %v280
        %v367 = vunpack.c.l.b16 %v281
        %v368 = vunpack.c.l.b16 %v282
        %v369 = vunpack.c.l.b16 %v283
        %v370 = vunpack.c.l.b16 %v284
        %v371 = vunpack.c.l.b16 %v285
        %v372 = vunpack.c.l.b16 %v286
        %v373 = vpack.c.b16 %v358, %v357
        %v374 = vpack.c.b16 %v360, %v359
        %v375 = vpack.c.b16 %v362, %v361
        %v376 = vpack.c.b16 %v364, %v363
        %v377 = vpack.c.b16 %v366, %v365
        %v378 = vpack.c.b16 %v368, %v367
        %v379 = vpack.c.b16 %v370, %v369
        %v380 = vpack.c.b16 %v372, %v371
        %v421 = vunpack.c.l.b16 %v287
        %v422 = vunpack.c.h.b16 %v287
        %v423 = vunpack.c.l.b16 %v288
        %v424 = vunpack.c.h.b16 %v288
        %v425 = vunpack.c.l.b16 %v289
        %v426 = vunpack.c.h.b16 %v289
        %v427 = vunpack.c.l.b16 %v290
        %v428 = vunpack.c.h.b16 %v290
        %v429 = vunpack.c.l.b16 %v291
        %v430 = vunpack.c.h.b16 %v291
        %v431 = vunpack.c.l.b16 %v292
        %v432 = vunpack.c.h.b16 %v292
        %v433 = vunpack.c.l.b16 %v293
        %v434 = vunpack.c.h.b16 %v293
        %v435 = vunpack.c.l.b16 %v294
        %v436 = vunpack.c.h.b16 %v294
        %v437 = vunpack.c.l.b16 %v295
        %v438 = vunpack.c.h.b16 %v295
        %v439 = vunpack.c.l.b16 %v296
        %v440 = vunpack.c.h.b16 %v296
        %v441 = vunpack.c.l.b16 %v297
        %v442 = vunpack.c.h.b16 %v297
        %v443 = vunpack.c.l.b16 %v298
        %v444 = vunpack.c.h.b16 %v298
        %v445 = vunpack.c.l.b16 %v299
        %v446 = vunpack.c.h.b16 %v299
        %v447 = vunpack.c.l.b16 %v300
        %v448 = vunpack.c.h.b16 %v300
        %v449 = vunpack.c.l.b16 %v301
        %v450 = vunpack.c.h.b16 %v301
        %v451 = vunpack.c.l.b16 %v302
        %v452 = vunpack.c.h.b16 %v302
        %v453 = vunpack.c.l.b16 %v303
        %v454 = vunpack.c.h.b16 %v303
        %v455 = vunpack.c.l.b16 %v304
        %v456 = vunpack.c.h.b16 %v304
        %v457 = vunpack.c.l.b16 %v305
        %v458 = vunpack.c.h.b16 %v305
        %v459 = vunpack.c.l.b16 %v306
        %v460 = vunpack.c.h.b16 %v306
        %v461 = vunpack.c.l.b16 %v307
        %v462 = vunpack.c.h.b16 %v307
        %v463 = vunpack.c.l.b16 %v308
        %v464 = vunpack.c.h.b16 %v308
        %v465 = vunpack.c.l.b16 %v309
        %v466 = vunpack.c.h.b16 %v309
        %v467 = vunpack.c.l.b16 %v310
        %v468 = vunpack.c.h.b16 %v310
        %v469 = vunpack.c.l.b16 %v311
        %v470 = vunpack.c.h.b16 %v311
        %v471 = vunpack.c.l.b16 %v312
        %v472 = vunpack.c.h.b16 %v312
        %v473 = vunpack.c.l.b16 %v313
        %v474 = vunpack.c.h.b16 %v313
        %v475 = vunpack.c.l.b16 %v314
        %v476 = vunpack.c.h.b16 %v314
        %v477 = vunpack.c.l.b16 %v315
        %v478 = vunpack.c.h.b16 %v315
        %v479 = vunpack.c.l.b16 %v316
        %v480 = vunpack.c.h.b16 %v316
        %v481 = vunpack.c.l.b16 %v317
        %v482 = vunpack.c.h.b16 %v317
        %v483 = vunpack.c.l.b16 %v318
        %v484 = vunpack.c.h.b16 %v318
        %v485 = vpack.c.b16 %v425, %v421
        %v486 = vpack.c.b16 %v426, %v422
        %v487 = vpack.c.b16 %v427, %v423
        %v488 = vpack.c.b16 %v428, %v424
        %v489 = vpack.c.b16 %v433, %v429
        %v490 = vpack.c.b16 %v434, %v430
        %v491 = vpack.c.b16 %v435, %v431
        %v492 = vpack.c.b16 %v436, %v432
        %v493 = vpack.c.b16 %v441, %v437
        %v494 = vpack.c.b16 %v442, %v438
        %v495 = vpack.c.b16 %v443, %v439
        %v496 = vpack.c.b16 %v444, %v440
        %v497 = vpack.c.b16 %v449, %v445
        %v498 = vpack.c.b16 %v450, %v446
        %v499 = vpack.c.b16 %v451, %v447
        %v500 = vpack.c.b16 %v452, %v448
        %v501 = vpack.c.b16 %v457, %v453
        %v502 = vpack.c.b16 %v458, %v454
        %v503 = vpack.c.b16 %v459, %v455
        %v504 = vpack.c.b16 %v460, %v456
        %v505 = vpack.c.b16 %v465, %v461
        %v506 = vpack.c.b16 %v466, %v462
        %v507 = vpack.c.b16 %v467, %v463
        %v508 = vpack.c.b16 %v468, %v464
        %v509 = vpack.c.b16 %v473, %v469
        %v510 = vpack.c.b16 %v474, %v470
        %v511 = vpack.c.b16 %v475, %v471
        %v512 = vpack.c.b16 %v476, %v472
        %v513 = vpack.c.b16 %v481, %v477
        %v514 = vpack.c.b16 %v482, %v478
        %v515 = vpack.c.b16 %v483, %v479
        %v516 = vpack.c.b16 %v484, %v480
        %549 = vmatprep.subr.bf16.mxu0 %v514
        %550 = vmatpush1.bf16.msra.mxu0 %v513
        %551 = vmatprep.subr.bf16.mxu0 %v510
        %552 = vmatpush1.bf16.msra.mxu0 %v509
        %553 = vmatprep.subr.bf16.mxu0 %v506
        %554 = vmatpush1.bf16.msra.mxu0 %v505
        %555 = vmatprep.subr.bf16.mxu0 %v502
        %556 = vmatpush1.bf16.msra.mxu0 %v501
        %557 = vmatprep.subr.bf16.mxu0 %v498
        %558 = vmatpush1.bf16.msra.mxu0 %v497
        %559 = vmatprep.subr.bf16.mxu0 %v494
        %560 = vmatpush1.bf16.msra.mxu0 %v493
        %561 = vmatprep.subr.bf16.mxu0 %v490
        %562 = vmatpush1.bf16.msra.mxu0 %v489
        %563 = vmatprep.subr.bf16.mxu0 %v486
        %564 = vmatpush1.bf16.msra.mxu0 %v485
        %565 = vmatprep.subr.bf16.mxu0 0
        %566 = vmatpush2.bf16.msra.mxu0 0
        %567 = vmatprep.subr.bf16.mxu0 0
        %568 = vmatpush2.bf16.msra.mxu0 0
        %569 = vmatprep.subr.bf16.mxu0 0
        %570 = vmatpush2.bf16.msra.mxu0 0
        %571 = vmatprep.subr.bf16.mxu0 0
        %572 = vmatpush2.bf16.msra.mxu0 0
        %573 = vmatprep.subr.bf16.mxu0 0
        %574 = vmatpush2.bf16.msra.mxu0 0
        %575 = vmatprep.subr.bf16.mxu0 0
        %576 = vmatpush2.bf16.msra.mxu0 0
        %577 = vmatprep.subr.bf16.mxu0 0
        %578 = vmatpush2.bf16.msra.mxu0 0
        %579 = vmatprep.subr.bf16.mxu0 0
        %580 = vmatpush2.bf16.msra.mxu0 0
        %581 = vmatprep.mubr.bf16.mxu0 0
        %582 = vmatmul.mubr.bf16.gmra.mxu0 %v373
        %v583 = vpop.f32.mrf.mxu0
        %v584 = vadd.f32 %v324, %v583
        %v585 = vpop.f32.mrf.mxu0
        %v586 = vadd.f32 %v328, %v585
        %v587 = vpop.f32.mrf.mxu0
        %v588 = vadd.f32 %v324, %v587
        %v589 = vpop.f32.mrf.mxu0
        %v590 = vadd.f32 %v328, %v589
        %591 = vmatprep.mubr.bf16.mxu0 0
        %592 = vmatmul.mubr.bf16.gmra.mxu0 %v374
        %v593 = vpop.f32.mrf.mxu0
        %v594 = vadd.f32 %v324, %v593
        %v595 = vpop.f32.mrf.mxu0
        %v596 = vadd.f32 %v328, %v595
        %v597 = vpop.f32.mrf.mxu0
        %v598 = vadd.f32 %v324, %v597
        %v599 = vpop.f32.mrf.mxu0
        %v600 = vadd.f32 %v328, %v599
        %601 = vmatprep.mubr.bf16.mxu0 0
        %602 = vmatmul.mubr.bf16.gmra.mxu0 %v375
        %v603 = vpop.f32.mrf.mxu0
        %v604 = vadd.f32 %v324, %v603
        %v605 = vpop.f32.mrf.mxu0
        %v606 = vadd.f32 %v328, %v605
        %v607 = vpop.f32.mrf.mxu0
        %v608 = vadd.f32 %v324, %v607
        %v609 = vpop.f32.mrf.mxu0
        %v610 = vadd.f32 %v328, %v609
        %611 = vmatprep.mubr.bf16.mxu0 0
        %612 = vmatmul.mubr.bf16.gmra.mxu0 %v376
        %v613 = vpop.f32.mrf.mxu0
        %v614 = vadd.f32 %v324, %v613
        %v615 = vpop.f32.mrf.mxu0
        %v616 = vadd.f32 %v328, %v615
        %v617 = vpop.f32.mrf.mxu0
        %v618 = vadd.f32 %v324, %v617
        %v619 = vpop.f32.mrf.mxu0
        %v620 = vadd.f32 %v328, %v619
        %621 = vmatprep.mubr.bf16.mxu0 0
        %622 = vmatmul.mubr.bf16.gmra.mxu0 %v377
        %v623 = vpop.f32.mrf.mxu0
        %v624 = vadd.f32 %v324, %v623
        %v625 = vpop.f32.mrf.mxu0
        %v626 = vadd.f32 %v328, %v625
        %v627 = vpop.f32.mrf.mxu0
        %v628 = vadd.f32 %v324, %v627
        %v629 = vpop.f32.mrf.mxu0
        %v630 = vadd.f32 %v328, %v629
        %631 = vmatprep.mubr.bf16.mxu0 0
        %632 = vmatmul.mubr.bf16.gmra.mxu0 %v378
        %v633 = vpop.f32.mrf.mxu0
        %v634 = vadd.f32 %v324, %v633
        %v635 = vpop.f32.mrf.mxu0
        %v636 = vadd.f32 %v328, %v635
        %v637 = vpop.f32.mrf.mxu0
        %v638 = vadd.f32 %v324, %v637
        %v639 = vpop.f32.mrf.mxu0
        %v640 = vadd.f32 %v328, %v639
        %641 = vmatprep.mubr.bf16.mxu0 0
        %642 = vmatmul.mubr.bf16.gmra.mxu0 %v379
        %v643 = vpop.f32.mrf.mxu0
        %v644 = vadd.f32 %v324, %v643
        %v645 = vpop.f32.mrf.mxu0
        %v646 = vadd.f32 %v328, %v645
        %v647 = vpop.f32.mrf.mxu0
        %v648 = vadd.f32 %v324, %v647
        %v649 = vpop.f32.mrf.mxu0
        %v650 = vadd.f32 %v328, %v649
        %651 = vmatprep.mubr.bf16.mxu0 0
        %652 = vmatmul.mubr.bf16.gmra.mxu0 %v380
        %v653 = vpop.f32.mrf.mxu0
        %v654 = vadd.f32 %v324, %v653
        %v655 = vpop.f32.mrf.mxu0
        %v656 = vadd.f32 %v328, %v655
        %v657 = vpop.f32.mrf.mxu0
        %v658 = vadd.f32 %v324, %v657
        %v659 = vpop.f32.mrf.mxu0
        %v660 = vadd.f32 %v328, %v659
        %661 = vdwg.mxu0
        %662 = vmatprep.subr.bf16.mxu0 %v516
        %663 = vmatpush1.bf16.msra.mxu0 %v515
        %664 = vmatprep.subr.bf16.mxu0 %v512
        %665 = vmatpush1.bf16.msra.mxu0 %v511
        %666 = vmatprep.subr.bf16.mxu0 %v508
        %667 = vmatpush1.bf16.msra.mxu0 %v507
        %668 = vmatprep.subr.bf16.mxu0 %v504
        %669 = vmatpush1.bf16.msra.mxu0 %v503
        %670 = vmatprep.subr.bf16.mxu0 %v500
        %671 = vmatpush1.bf16.msra.mxu0 %v499
        %672 = vmatprep.subr.bf16.mxu0 %v496
        %673 = vmatpush1.bf16.msra.mxu0 %v495
        %674 = vmatprep.subr.bf16.mxu0 %v492
        %675 = vmatpush1.bf16.msra.mxu0 %v491
        %676 = vmatprep.subr.bf16.mxu0 %v488
        %677 = vmatpush1.bf16.msra.mxu0 %v487
        %678 = vmatprep.subr.bf16.mxu0 0
        %679 = vmatpush2.bf16.msra.mxu0 0
        %680 = vmatprep.subr.bf16.mxu0 0
        %681 = vmatpush2.bf16.msra.mxu0 0
        %682 = vmatprep.subr.bf16.mxu0 0
        %683 = vmatpush2.bf16.msra.mxu0 0
        %684 = vmatprep.subr.bf16.mxu0 0
        %685 = vmatpush2.bf16.msra.mxu0 0
        %686 = vmatprep.subr.bf16.mxu0 0
        %687 = vmatpush2.bf16.msra.mxu0 0
        %688 = vmatprep.subr.bf16.mxu0 0
        %689 = vmatpush2.bf16.msra.mxu0 0
        %690 = vmatprep.subr.bf16.mxu0 0
        %691 = vmatpush2.bf16.msra.mxu0 0
        %692 = vmatprep.subr.bf16.mxu0 0
        %693 = vmatpush2.bf16.msra.mxu0 0
        %694 = vmatprep.mubr.bf16.mxu0 0
        %695 = vmatmul.mubr.bf16.gmra.mxu0 %v373
        %v696 = vpop.f32.mrf.mxu0
        %v697 = vadd.f32 %v332, %v696
        %v698 = vpop.f32.mrf.mxu0
        %v699 = vadd.f32 %v336, %v698
        %v700 = vpop.f32.mrf.mxu0
        %v701 = vadd.f32 %v332, %v700
        %v702 = vpop.f32.mrf.mxu0
        %v703 = vadd.f32 %v336, %v702
        %704 = vmatprep.mubr.bf16.mxu0 0
        %705 = vmatmul.mubr.bf16.gmra.mxu0 %v374
        %v706 = vpop.f32.mrf.mxu0
        %v707 = vadd.f32 %v332, %v706
        %v708 = vpop.f32.mrf.mxu0
        %v709 = vadd.f32 %v336, %v708
        %v710 = vpop.f32.mrf.mxu0
        %v711 = vadd.f32 %v332, %v710
        %v712 = vpop.f32.mrf.mxu0
        %v713 = vadd.f32 %v336, %v712
        %714 = vmatprep.mubr.bf16.mxu0 0
        %715 = vmatmul.mubr.bf16.gmra.mxu0 %v375
        %v716 = vpop.f32.mrf.mxu0
        %v717 = vadd.f32 %v332, %v716
        %v718 = vpop.f32.mrf.mxu0
        %v719 = vadd.f32 %v336, %v718
        %v720 = vpop.f32.mrf.mxu0
        %v721 = vadd.f32 %v332, %v720
        %v722 = vpop.f32.mrf.mxu0
        %v723 = vadd.f32 %v336, %v722
        %724 = vmatprep.mubr.bf16.mxu0 0
        %725 = vmatmul.mubr.bf16.gmra.mxu0 %v376
        %v726 = vpop.f32.mrf.mxu0
        %v727 = vadd.f32 %v332, %v726
        %v728 = vpop.f32.mrf.mxu0
        %v729 = vadd.f32 %v336, %v728
        %v730 = vpop.f32.mrf.mxu0
        %v731 = vadd.f32 %v332, %v730
        %v732 = vpop.f32.mrf.mxu0
        %v733 = vadd.f32 %v336, %v732
        %734 = vmatprep.mubr.bf16.mxu0 0
        %735 = vmatmul.mubr.bf16.gmra.mxu0 %v377
        %v736 = vpop.f32.mrf.mxu0
        %v737 = vadd.f32 %v332, %v736
        %v738 = vpop.f32.mrf.mxu0
        %v739 = vadd.f32 %v336, %v738
        %v740 = vpop.f32.mrf.mxu0
        %v741 = vadd.f32 %v332, %v740
        %v742 = vpop.f32.mrf.mxu0
        %v743 = vadd.f32 %v336, %v742
        %744 = vmatprep.mubr.bf16.mxu0 0
        %745 = vmatmul.mubr.bf16.gmra.mxu0 %v378
        %v746 = vpop.f32.mrf.mxu0
        %v747 = vadd.f32 %v332, %v746
        %v748 = vpop.f32.mrf.mxu0
        %v749 = vadd.f32 %v336, %v748
        %v750 = vpop.f32.mrf.mxu0
        %v751 = vadd.f32 %v332, %v750
        %v752 = vpop.f32.mrf.mxu0
        %v753 = vadd.f32 %v336, %v752
        %754 = vmatprep.mubr.bf16.mxu0 0
        %755 = vmatmul.mubr.bf16.gmra.mxu0 %v379
        %v756 = vpop.f32.mrf.mxu0
        %v757 = vadd.f32 %v332, %v756
        %v758 = vpop.f32.mrf.mxu0
        %v759 = vadd.f32 %v336, %v758
        %v760 = vpop.f32.mrf.mxu0
        %v761 = vadd.f32 %v332, %v760
        %v762 = vpop.f32.mrf.mxu0
        %v763 = vadd.f32 %v336, %v762
        %764 = vmatprep.mubr.bf16.mxu0 0
        %765 = vmatmul.mubr.bf16.gmra.mxu0 %v380
        %v766 = vpop.f32.mrf.mxu0
        %v767 = vadd.f32 %v332, %v766
        %v768 = vpop.f32.mrf.mxu0
        %v769 = vadd.f32 %v336, %v768
        %v770 = vpop.f32.mrf.mxu0
        %v771 = vadd.f32 %v332, %v770
        %v772 = vpop.f32.mrf.mxu0
        %v773 = vadd.f32 %v336, %v772
        %774 = vdwg.mxu0
        %v775 = vmax.f32 %v584, 0.0
        %v776 = vmax.f32 %v586, 0.0
        %v777 = vmax.f32 %v697, 0.0
        %v778 = vmax.f32 %v699, 0.0
        %v779 = vmax.f32 %v588, 0.0
        %v780 = vmax.f32 %v590, 0.0
        %v781 = vmax.f32 %v701, 0.0
        %v782 = vmax.f32 %v703, 0.0
        %v783 = vmax.f32 %v594, 0.0
        %v784 = vmax.f32 %v596, 0.0
        %v785 = vmax.f32 %v707, 0.0
        %v786 = vmax.f32 %v709, 0.0
        %v787 = vmax.f32 %v598, 0.0
        %v788 = vmax.f32 %v600, 0.0
        %v789 = vmax.f32 %v711, 0.0
        %v790 = vmax.f32 %v713, 0.0
        %v791 = vmax.f32 %v604, 0.0
        %v792 = vmax.f32 %v606, 0.0
        %v793 = vmax.f32 %v717, 0.0
        %v794 = vmax.f32 %v719, 0.0
        %v795 = vmax.f32 %v608, 0.0
        %v796 = vmax.f32 %v610, 0.0
        %v797 = vmax.f32 %v721, 0.0
        %v798 = vmax.f32 %v723, 0.0
        %v799 = vmax.f32 %v614, 0.0
        %v800 = vmax.f32 %v616, 0.0
        %v801 = vmax.f32 %v727, 0.0
        %v802 = vmax.f32 %v729, 0.0
        %v803 = vmax.f32 %v618, 0.0
        %v804 = vmax.f32 %v620, 0.0
        %v805 = vmax.f32 %v731, 0.0
        %v806 = vmax.f32 %v733, 0.0
        %v807 = vmax.f32 %v624, 0.0
        %v808 = vmax.f32 %v626, 0.0
        %v809 = vmax.f32 %v737, 0.0
        %v810 = vmax.f32 %v739, 0.0
        %v811 = vmax.f32 %v628, 0.0
        %v812 = vmax.f32 %v630, 0.0
        %v813 = vmax.f32 %v741, 0.0
        %v814 = vmax.f32 %v743, 0.0
        %v815 = vmax.f32 %v634, 0.0
        %v816 = vmax.f32 %v636, 0.0
        %v817 = vmax.f32 %v747, 0.0
        %v818 = vmax.f32 %v749, 0.0
        %v819 = vmax.f32 %v638, 0.0
        %v820 = vmax.f32 %v640, 0.0
        %v821 = vmax.f32 %v751, 0.0
        %v822 = vmax.f32 %v753, 0.0
        %v823 = vmax.f32 %v644, 0.0
        %v824 = vmax.f32 %v646, 0.0
        %v825 = vmax.f32 %v757, 0.0
        %v826 = vmax.f32 %v759, 0.0
        %v827 = vmax.f32 %v648, 0.0
        %v828 = vmax.f32 %v650, 0.0
        %v829 = vmax.f32 %v761, 0.0
        %v830 = vmax.f32 %v763, 0.0
        %v831 = vmax.f32 %v654, 0.0
        %v832 = vmax.f32 %v656, 0.0
        %v833 = vmax.f32 %v767, 0.0
        %v834 = vmax.f32 %v769, 0.0
        %v835 = vmax.f32 %v658, 0.0
        %v836 = vmax.f32 %v660, 0.0
        %v837 = vmax.f32 %v771, 0.0
        %v838 = vmax.f32 %v773, 0.0
        %v839 = vld [vmem:[%s3] sm:$0xf]
        %v841 = vlaneseq
        %v842 = vshrl.u32 %v841, 7
        %v843 = vsub.s32 0, %v842
        %v844 = vrot.slane %v839, %v843
        %v845 = vlaneseq
        %v846 = vshrl.u32 %v845, 7
        %v847 = vsub.s32 1, %v846
        %v848 = vrot.slane %v839, %v847
        %v849 = vlaneseq
        %v850 = vshrl.u32 %v849, 7
        %v851 = vsub.s32 2, %v850
        %v852 = vrot.slane %v839, %v851
        %v853 = vlaneseq
        %v854 = vshrl.u32 %v853, 7
        %v855 = vsub.s32 3, %v854
        %v856 = vrot.slane %v839, %v855
        %v861 = vmul.f32 %v775, %v844
        %v862 = vmul.f32 %v776, %v848
        %v863 = vmul.f32 %v777, %v852
        %v864 = vmul.f32 %v778, %v856
        %v865 = vmul.f32 %v779, %v844
        %v866 = vmul.f32 %v780, %v848
        %v867 = vmul.f32 %v781, %v852
        %v868 = vmul.f32 %v782, %v856
        %v869 = vmul.f32 %v783, %v844
        %v870 = vmul.f32 %v784, %v848
        %v871 = vmul.f32 %v785, %v852
        %v872 = vmul.f32 %v786, %v856
        %v873 = vmul.f32 %v787, %v844
        %v874 = vmul.f32 %v788, %v848
        %v875 = vmul.f32 %v789, %v852
        %v876 = vmul.f32 %v790, %v856
        %v877 = vmul.f32 %v791, %v844
        %v878 = vmul.f32 %v792, %v848
        %v879 = vmul.f32 %v793, %v852
        %v880 = vmul.f32 %v794, %v856
        %v881 = vmul.f32 %v795, %v844
        %v882 = vmul.f32 %v796, %v848
        %v883 = vmul.f32 %v797, %v852
        %v884 = vmul.f32 %v798, %v856
        %v885 = vmul.f32 %v799, %v844
        %v886 = vmul.f32 %v800, %v848
        %v887 = vmul.f32 %v801, %v852
        %v888 = vmul.f32 %v802, %v856
        %v889 = vmul.f32 %v803, %v844
        %v890 = vmul.f32 %v804, %v848
        %v891 = vmul.f32 %v805, %v852
        %v892 = vmul.f32 %v806, %v856
        %v893 = vmul.f32 %v807, %v844
        %v894 = vmul.f32 %v808, %v848
        %v895 = vmul.f32 %v809, %v852
        %v896 = vmul.f32 %v810, %v856
        %v897 = vmul.f32 %v811, %v844
        %v898 = vmul.f32 %v812, %v848
        %v899 = vmul.f32 %v813, %v852
        %v900 = vmul.f32 %v814, %v856
        %v901 = vmul.f32 %v815, %v844
        %v902 = vmul.f32 %v816, %v848
        %v903 = vmul.f32 %v817, %v852
        %v904 = vmul.f32 %v818, %v856
        %v905 = vmul.f32 %v819, %v844
        %v906 = vmul.f32 %v820, %v848
        %v907 = vmul.f32 %v821, %v852
        %v908 = vmul.f32 %v822, %v856
        %v909 = vmul.f32 %v823, %v844
        %v910 = vmul.f32 %v824, %v848
        %v911 = vmul.f32 %v825, %v852
        %v912 = vmul.f32 %v826, %v856
        %v913 = vmul.f32 %v827, %v844
        %v914 = vmul.f32 %v828, %v848
        %v915 = vmul.f32 %v829, %v852
        %v916 = vmul.f32 %v830, %v856
        %v917 = vmul.f32 %v831, %v844
        %v918 = vmul.f32 %v832, %v848
        %v919 = vmul.f32 %v833, %v852
        %v920 = vmul.f32 %v834, %v856
        %v921 = vmul.f32 %v835, %v844
        %v922 = vmul.f32 %v836, %v848
        %v923 = vmul.f32 %v837, %v852
        %v924 = vmul.f32 %v838, %v856
        %v925 = vadd.f32 %v861, %v862
        %v926 = vadd.f32 %v925, %v863
        %v927 = vadd.f32 %v926, %v864
        %928 = vadd.xlane.f32.xlu0 %v927
        %v929 = vpop.xlane.xlu0 %928
        %v930 = vadd.f32 %v865, %v866
        %v931 = vadd.f32 %v930, %v867
        %v932 = vadd.f32 %v931, %v868
        %933 = vadd.xlane.f32.xlu0 %v932
        %v934 = vpop.xlane.xlu0 %933
        %v935 = vadd.f32 %v869, %v870
        %v936 = vadd.f32 %v935, %v871
        %v937 = vadd.f32 %v936, %v872
        %938 = vadd.xlane.f32.xlu0 %v937
        %v939 = vpop.xlane.xlu0 %938
        %v940 = vadd.f32 %v873, %v874
        %v941 = vadd.f32 %v940, %v875
        %v942 = vadd.f32 %v941, %v876
        %943 = vadd.xlane.f32.xlu0 %v942
        %v944 = vpop.xlane.xlu0 %943
        %v945 = vadd.f32 %v877, %v878
        %v946 = vadd.f32 %v945, %v879
        %v947 = vadd.f32 %v946, %v880
        %948 = vadd.xlane.f32.xlu0 %v947
        %v949 = vpop.xlane.xlu0 %948
        %v950 = vadd.f32 %v881, %v882
        %v951 = vadd.f32 %v950, %v883
        %v952 = vadd.f32 %v951, %v884
        %953 = vadd.xlane.f32.xlu0 %v952
        %v954 = vpop.xlane.xlu0 %953
        %v955 = vadd.f32 %v885, %v886
        %v956 = vadd.f32 %v955, %v887
        %v957 = vadd.f32 %v956, %v888
        %958 = vadd.xlane.f32.xlu0 %v957
        %v959 = vpop.xlane.xlu0 %958
        %v960 = vadd.f32 %v889, %v890
        %v961 = vadd.f32 %v960, %v891
        %v962 = vadd.f32 %v961, %v892
        %963 = vadd.xlane.f32.xlu0 %v962
        %v964 = vpop.xlane.xlu0 %963
        %v965 = vadd.f32 %v893, %v894
        %v966 = vadd.f32 %v965, %v895
        %v967 = vadd.f32 %v966, %v896
        %968 = vadd.xlane.f32.xlu0 %v967
        %v969 = vpop.xlane.xlu0 %968
        %v970 = vadd.f32 %v897, %v898
        %v971 = vadd.f32 %v970, %v899
        %v972 = vadd.f32 %v971, %v900
        %973 = vadd.xlane.f32.xlu0 %v972
        %v974 = vpop.xlane.xlu0 %973
        %v975 = vadd.f32 %v901, %v902
        %v976 = vadd.f32 %v975, %v903
        %v977 = vadd.f32 %v976, %v904
        %978 = vadd.xlane.f32.xlu0 %v977
        %v979 = vpop.xlane.xlu0 %978
        %v980 = vadd.f32 %v905, %v906
        %v981 = vadd.f32 %v980, %v907
        %v982 = vadd.f32 %v981, %v908
        %983 = vadd.xlane.f32.xlu0 %v982
        %v984 = vpop.xlane.xlu0 %983
        %v985 = vadd.f32 %v909, %v910
        %v986 = vadd.f32 %v985, %v911
        %v987 = vadd.f32 %v986, %v912
        %988 = vadd.xlane.f32.xlu0 %v987
        %v989 = vpop.xlane.xlu0 %988
        %v990 = vadd.f32 %v913, %v914
        %v991 = vadd.f32 %v990, %v915
        %v992 = vadd.f32 %v991, %v916
        %993 = vadd.xlane.f32.xlu0 %v992
        %v994 = vpop.xlane.xlu0 %993
        %v995 = vadd.f32 %v917, %v918
        %v996 = vadd.f32 %v995, %v919
        %v997 = vadd.f32 %v996, %v920
        %998 = vadd.xlane.f32.xlu0 %v997
        %v999 = vpop.xlane.xlu0 %998
        %v1000 = vadd.f32 %v921, %v922
        %v1001 = vadd.f32 %v1000, %v923
        %v1002 = vadd.f32 %v1001, %v924
        %1003 = vadd.xlane.f32.xlu0 %v1002
        %v1004 = vpop.xlane.xlu0 %1003
        %v1005 = vmax.f32 %v929, %v934
        %v1006 = vrot.slane %v1005, 4
        %v1007 = vmax.f32 %v1005, %v1006
        %v1008 = vrot.slane %v1007, 2
        %v1009 = vmax.f32 %v1007, %v1008
        %v1010 = vrot.slane %v1009, 1
        %v1011 = vmax.f32 %v1009, %v1010
        %v1012 = vmax.f32 %v939, %v944
        %v1013 = vrot.slane %v1012, 4
        %v1014 = vmax.f32 %v1012, %v1013
        %v1015 = vrot.slane %v1014, 2
        %v1016 = vmax.f32 %v1014, %v1015
        %v1017 = vrot.slane %v1016, 1
        %v1018 = vmax.f32 %v1016, %v1017
        %v1019 = vmax.f32 %v949, %v954
        %v1020 = vrot.slane %v1019, 4
        %v1021 = vmax.f32 %v1019, %v1020
        %v1022 = vrot.slane %v1021, 2
        %v1023 = vmax.f32 %v1021, %v1022
        %v1024 = vrot.slane %v1023, 1
        %v1025 = vmax.f32 %v1023, %v1024
        %v1026 = vmax.f32 %v959, %v964
        %v1027 = vrot.slane %v1026, 4
        %v1028 = vmax.f32 %v1026, %v1027
        %v1029 = vrot.slane %v1028, 2
        %v1030 = vmax.f32 %v1028, %v1029
        %v1031 = vrot.slane %v1030, 1
        %v1032 = vmax.f32 %v1030, %v1031
        %v1033 = vmax.f32 %v969, %v974
        %v1034 = vrot.slane %v1033, 4
        %v1035 = vmax.f32 %v1033, %v1034
        %v1036 = vrot.slane %v1035, 2
        %v1037 = vmax.f32 %v1035, %v1036
        %v1038 = vrot.slane %v1037, 1
        %v1039 = vmax.f32 %v1037, %v1038
        %v1040 = vmax.f32 %v979, %v984
        %v1041 = vrot.slane %v1040, 4
        %v1042 = vmax.f32 %v1040, %v1041
        %v1043 = vrot.slane %v1042, 2
        %v1044 = vmax.f32 %v1042, %v1043
        %v1045 = vrot.slane %v1044, 1
        %v1046 = vmax.f32 %v1044, %v1045
        %v1047 = vmax.f32 %v989, %v994
        %v1048 = vrot.slane %v1047, 4
        %v1049 = vmax.f32 %v1047, %v1048
        %v1050 = vrot.slane %v1049, 2
        %v1051 = vmax.f32 %v1049, %v1050
        %v1052 = vrot.slane %v1051, 1
        %v1053 = vmax.f32 %v1051, %v1052
        %v1054 = vmax.f32 %v999, %v1004
        %v1055 = vrot.slane %v1054, 4
        %v1056 = vmax.f32 %v1054, %v1055
        %v1057 = vrot.slane %v1056, 2
        %v1058 = vmax.f32 %v1056, %v1057
        %v1059 = vrot.slane %v1058, 1
        %v1060 = vmax.f32 %v1058, %v1059
        %v1061 = vsub.f32 %v929, %v1011
        %v1062 = vsub.f32 %v934, %v1011
        %v1063 = vsub.f32 %v939, %v1018
        %v1064 = vsub.f32 %v944, %v1018
        %v1065 = vsub.f32 %v949, %v1025
        %v1066 = vsub.f32 %v954, %v1025
        %v1067 = vsub.f32 %v959, %v1032
        %v1068 = vsub.f32 %v964, %v1032
        %v1069 = vsub.f32 %v969, %v1039
        %v1070 = vsub.f32 %v974, %v1039
        %v1071 = vsub.f32 %v979, %v1046
        %v1072 = vsub.f32 %v984, %v1046
        %v1073 = vsub.f32 %v989, %v1053
        %v1074 = vsub.f32 %v994, %v1053
        %v1075 = vsub.f32 %v999, %v1060
        %v1076 = vsub.f32 %v1004, %v1060
        %v1077 = vmul.f32 %v1061, 1.442695
        %v1078 = vpow.pop %v1077
        %v1079 = vmul.f32 %v1062, 1.442695
        %v1080 = vpow.pop %v1079
        %v1081 = vmul.f32 %v1063, 1.442695
        %v1082 = vpow.pop %v1081
        %v1083 = vmul.f32 %v1064, 1.442695
        %v1084 = vpow.pop %v1083
        %v1085 = vmul.f32 %v1065, 1.442695
        %v1086 = vpow.pop %v1085
        %v1087 = vmul.f32 %v1066, 1.442695
        %v1088 = vpow.pop %v1087
        %v1089 = vmul.f32 %v1067, 1.442695
        %v1090 = vpow.pop %v1089
        %v1091 = vmul.f32 %v1068, 1.442695
        %v1092 = vpow.pop %v1091
        %v1093 = vmul.f32 %v1069, 1.442695
        %v1094 = vpow.pop %v1093
        %v1095 = vmul.f32 %v1070, 1.442695
        %v1096 = vpow.pop %v1095
        %v1097 = vmul.f32 %v1071, 1.442695
        %v1098 = vpow.pop %v1097
        %v1099 = vmul.f32 %v1072, 1.442695
        %v1100 = vpow.pop %v1099
        %v1101 = vmul.f32 %v1073, 1.442695
        %v1102 = vpow.pop %v1101
        %v1103 = vmul.f32 %v1074, 1.442695
        %v1104 = vpow.pop %v1103
        %v1105 = vmul.f32 %v1075, 1.442695
        %v1106 = vpow.pop %v1105
        %v1107 = vmul.f32 %v1076, 1.442695
        %v1108 = vpow.pop %v1107
        %v1109 = vadd.f32 %v1078, %v1080
        %v1110 = vrot.slane %v1109, 4
        %v1111 = vadd.f32 %v1109, %v1110
        %v1112 = vrot.slane %v1111, 2
        %v1113 = vadd.f32 %v1111, %v1112
        %v1114 = vrot.slane %v1113, 1
        %v1115 = vadd.f32 %v1113, %v1114
        %v1116 = vadd.f32 %v1082, %v1084
        %v1117 = vrot.slane %v1116, 4
        %v1118 = vadd.f32 %v1116, %v1117
        %v1119 = vrot.slane %v1118, 2
        %v1120 = vadd.f32 %v1118, %v1119
        %v1121 = vrot.slane %v1120, 1
        %v1122 = vadd.f32 %v1120, %v1121
        %v1123 = vadd.f32 %v1086, %v1088
        %v1124 = vrot.slane %v1123, 4
        %v1125 = vadd.f32 %v1123, %v1124
        %v1126 = vrot.slane %v1125, 2
        %v1127 = vadd.f32 %v1125, %v1126
        %v1128 = vrot.slane %v1127, 1
        %v1129 = vadd.f32 %v1127, %v1128
        %v1130 = vadd.f32 %v1090, %v1092
        %v1131 = vrot.slane %v1130, 4
        %v1132 = vadd.f32 %v1130, %v1131
        %v1133 = vrot.slane %v1132, 2
        %v1134 = vadd.f32 %v1132, %v1133
        %v1135 = vrot.slane %v1134, 1
        %v1136 = vadd.f32 %v1134, %v1135
        %v1137 = vadd.f32 %v1094, %v1096
        %v1138 = vrot.slane %v1137, 4
        %v1139 = vadd.f32 %v1137, %v1138
        %v1140 = vrot.slane %v1139, 2
        %v1141 = vadd.f32 %v1139, %v1140
        %v1142 = vrot.slane %v1141, 1
        %v1143 = vadd.f32 %v1141, %v1142
        %v1144 = vadd.f32 %v1098, %v1100
        %v1145 = vrot.slane %v1144, 4
        %v1146 = vadd.f32 %v1144, %v1145
        %v1147 = vrot.slane %v1146, 2
        %v1148 = vadd.f32 %v1146, %v1147
        %v1149 = vrot.slane %v1148, 1
        %v1150 = vadd.f32 %v1148, %v1149
        %v1151 = vadd.f32 %v1102, %v1104
        %v1152 = vrot.slane %v1151, 4
        %v1153 = vadd.f32 %v1151, %v1152
        %v1154 = vrot.slane %v1153, 2
        %v1155 = vadd.f32 %v1153, %v1154
        %v1156 = vrot.slane %v1155, 1
        %v1157 = vadd.f32 %v1155, %v1156
        %v1158 = vadd.f32 %v1106, %v1108
        %v1159 = vrot.slane %v1158, 4
        %v1160 = vadd.f32 %v1158, %v1159
        %v1161 = vrot.slane %v1160, 2
        %v1162 = vadd.f32 %v1160, %v1161
        %v1163 = vrot.slane %v1162, 1
        %v1164 = vadd.f32 %v1162, %v1163
        %v1165 = vrcp.pop %v1115
        %v1166 = vrcp.pop %v1122
        %v1167 = vrcp.pop %v1129
        %v1168 = vrcp.pop %v1136
        %v1169 = vrcp.pop %v1143
        %v1170 = vrcp.pop %v1150
        %v1171 = vrcp.pop %v1157
        %v1172 = vrcp.pop %v1164
        %v1173 = vmul.f32 %v1078, %v1165
        %v1174 = vmul.f32 %v1080, %v1165
        %v1175 = vmul.f32 %v1082, %v1166
        %v1176 = vmul.f32 %v1084, %v1166
        %v1177 = vmul.f32 %v1086, %v1167
        %v1178 = vmul.f32 %v1088, %v1167
        %v1179 = vmul.f32 %v1090, %v1168
        %v1180 = vmul.f32 %v1092, %v1168
        %v1181 = vmul.f32 %v1094, %v1169
        %v1182 = vmul.f32 %v1096, %v1169
        %v1183 = vmul.f32 %v1098, %v1170
        %v1184 = vmul.f32 %v1100, %v1170
        %v1185 = vmul.f32 %v1102, %v1171
        %v1186 = vmul.f32 %v1104, %v1171
        %v1187 = vmul.f32 %v1106, %v1172
        %v1188 = vmul.f32 %v1108, %v1172
        %v1189 = vunpack.c.l.bf16 %v271
        %v1190 = vunpack.c.l.bf16 %v272
        %v1191 = vunpack.c.l.bf16 %v273
        %v1192 = vunpack.c.l.bf16 %v274
        %v1193 = vunpack.c.l.bf16 %v275
        %v1194 = vunpack.c.l.bf16 %v276
        %v1195 = vunpack.c.l.bf16 %v277
        %v1196 = vunpack.c.l.bf16 %v278
        %v1197 = vunpack.c.l.bf16 %v279
        %v1198 = vunpack.c.l.bf16 %v280
        %v1199 = vunpack.c.l.bf16 %v281
        %v1200 = vunpack.c.l.bf16 %v282
        %v1201 = vunpack.c.l.bf16 %v283
        %v1202 = vunpack.c.l.bf16 %v284
        %v1203 = vunpack.c.l.bf16 %v285
        %v1204 = vunpack.c.l.bf16 %v286
        %v1205 = vmul.f32 %v1189, %v1173
        %v1206 = vmul.f32 %v1190, %v1174
        %v1207 = vmul.f32 %v1191, %v1175
        %v1208 = vmul.f32 %v1192, %v1176
        %v1209 = vmul.f32 %v1193, %v1177
        %v1210 = vmul.f32 %v1194, %v1178
        %v1211 = vmul.f32 %v1195, %v1179
        %v1212 = vmul.f32 %v1196, %v1180
        %v1213 = vmul.f32 %v1197, %v1181
        %v1214 = vmul.f32 %v1198, %v1182
        %v1215 = vmul.f32 %v1199, %v1183
        %v1216 = vmul.f32 %v1200, %v1184
        %v1217 = vmul.f32 %v1201, %v1185
        %v1218 = vmul.f32 %v1202, %v1186
        %v1219 = vmul.f32 %v1203, %v1187
        %v1220 = vmul.f32 %v1204, %v1188
        %v1221 = vadd.f32 %v1205, %v1206
        %v1222 = vrot.slane %v1221, 4
        %v1223 = vadd.f32 %v1221, %v1222
        %v1224 = vrot.slane %v1223, 2
        %v1225 = vadd.f32 %v1223, %v1224
        %v1226 = vrot.slane %v1225, 1
        %v1227 = vadd.f32 %v1225, %v1226
        %v1228 = vadd.f32 %v1207, %v1208
        %v1229 = vrot.slane %v1228, 4
        %v1230 = vadd.f32 %v1228, %v1229
        %v1231 = vrot.slane %v1230, 2
        %v1232 = vadd.f32 %v1230, %v1231
        %v1233 = vrot.slane %v1232, 1
        %v1234 = vadd.f32 %v1232, %v1233
        %v1235 = vadd.f32 %v1209, %v1210
        %v1236 = vrot.slane %v1235, 4
        %v1237 = vadd.f32 %v1235, %v1236
        %v1238 = vrot.slane %v1237, 2
        %v1239 = vadd.f32 %v1237, %v1238
        %v1240 = vrot.slane %v1239, 1
        %v1241 = vadd.f32 %v1239, %v1240
        %v1242 = vadd.f32 %v1211, %v1212
        %v1243 = vrot.slane %v1242, 4
        %v1244 = vadd.f32 %v1242, %v1243
        %v1245 = vrot.slane %v1244, 2
        %v1246 = vadd.f32 %v1244, %v1245
        %v1247 = vrot.slane %v1246, 1
        %v1248 = vadd.f32 %v1246, %v1247
        %v1249 = vadd.f32 %v1213, %v1214
        %v1250 = vrot.slane %v1249, 4
        %v1251 = vadd.f32 %v1249, %v1250
        %v1252 = vrot.slane %v1251, 2
        %v1253 = vadd.f32 %v1251, %v1252
        %v1254 = vrot.slane %v1253, 1
        %v1255 = vadd.f32 %v1253, %v1254
        %v1256 = vadd.f32 %v1215, %v1216
        %v1257 = vrot.slane %v1256, 4
        %v1258 = vadd.f32 %v1256, %v1257
        %v1259 = vrot.slane %v1258, 2
        %v1260 = vadd.f32 %v1258, %v1259
        %v1261 = vrot.slane %v1260, 1
        %v1262 = vadd.f32 %v1260, %v1261
        %v1263 = vadd.f32 %v1217, %v1218
        %v1264 = vrot.slane %v1263, 4
        %v1265 = vadd.f32 %v1263, %v1264
        %v1266 = vrot.slane %v1265, 2
        %v1267 = vadd.f32 %v1265, %v1266
        %v1268 = vrot.slane %v1267, 1
        %v1269 = vadd.f32 %v1267, %v1268
        %v1270 = vadd.f32 %v1219, %v1220
        %v1271 = vrot.slane %v1270, 4
        %v1272 = vadd.f32 %v1270, %v1271
        %v1273 = vrot.slane %v1272, 2
        %v1274 = vadd.f32 %v1272, %v1273
        %v1275 = vrot.slane %v1274, 1
        %v1276 = vadd.f32 %v1274, %v1275
        %v1277 = vld [vmem:[%s4] sm:$0xff]
        %v1278 = vld [vmem:[%s4 + $0x8] sm:$0xff]
        %v1279 = vld [vmem:[%s4 + $0x10] sm:$0xff]
        %v1280 = vld [vmem:[%s4 + $0x18] sm:$0xff]
        %v1281 = vld [vmem:[%s4 + $0x20] sm:$0xff]
        %v1282 = vld [vmem:[%s4 + $0x28] sm:$0xff]
        %v1283 = vld [vmem:[%s4 + $0x30] sm:$0xff]
        %v1284 = vld [vmem:[%s4 + $0x38] sm:$0xff]
        %v1285 = vld [vmem:[%s4 + $0x40] sm:$0xff]
        %v1286 = vld [vmem:[%s4 + $0x48] sm:$0xff]
        %v1287 = vld [vmem:[%s4 + $0x50] sm:$0xff]
        %v1288 = vld [vmem:[%s4 + $0x58] sm:$0xff]
        %v1289 = vld [vmem:[%s4 + $0x60] sm:$0xff]
        %v1290 = vld [vmem:[%s4 + $0x68] sm:$0xff]
        %v1291 = vld [vmem:[%s4 + $0x70] sm:$0xff]
        %v1292 = vld [vmem:[%s4 + $0x78] sm:$0xff]
        %v1293 = vld [vmem:[%s5] sm:$0x1]
        %v1295 = vlaneseq
        %v1296 = vshrl.u32 %v1295, 7
        %v1297 = vsub.s32 0, %v1296
        %v1298 = vrot.slane %v1293, %v1297
        %vm1308 = vcmask 1041409
        %v1309 = vsel %vm1308, %v1234, %v1227
        %vm1310 = vcmask 1042434
        %v1311 = vsel %vm1310, %v1241, %v1309
        %vm1312 = vcmask 1043459
        %v1313 = vsel %vm1312, %v1248, %v1311
        %vm1314 = vcmask 1044484
        %v1315 = vsel %vm1314, %v1255, %v1313
        %vm1316 = vcmask 1045509
        %v1317 = vsel %vm1316, %v1262, %v1315
        %vm1318 = vcmask 1046534
        %v1319 = vsel %vm1318, %v1269, %v1317
        %vm1320 = vcmask 1047559
        %v1321 = vsel %vm1320, %v1276, %v1319
        %1323 = vmatprep.subr.mxu0 0.0
        %1324 = vmatpush1.msra.mxu0 %v1292
        %1325 = vmatprep.subr.mxu0 0.0
        %1326 = vmatpush1.msra.mxu0 %v1291
        %1327 = vmatprep.subr.mxu0 0.0
        %1328 = vmatpush1.msra.mxu0 %v1290
        %1329 = vmatprep.subr.mxu0 0.0
        %1330 = vmatpush1.msra.mxu0 %v1289
        %1331 = vmatprep.subr.mxu0 0.0
        %1332 = vmatpush1.msra.mxu0 %v1288
        %1333 = vmatprep.subr.mxu0 0.0
        %1334 = vmatpush1.msra.mxu0 %v1287
        %1335 = vmatprep.subr.mxu0 0.0
        %1336 = vmatpush1.msra.mxu0 %v1286
        %1337 = vmatprep.subr.mxu0 0.0
        %1338 = vmatpush1.msra.mxu0 %v1285
        %1339 = vmatprep.subr.mxu0 0.0
        %1340 = vmatpush1.msra.mxu0 %v1284
        %1341 = vmatprep.subr.mxu0 0.0
        %1342 = vmatpush1.msra.mxu0 %v1283
        %1343 = vmatprep.subr.mxu0 0.0
        %1344 = vmatpush1.msra.mxu0 %v1282
        %1345 = vmatprep.subr.mxu0 0.0
        %1346 = vmatpush1.msra.mxu0 %v1281
        %1347 = vmatprep.subr.mxu0 0.0
        %1348 = vmatpush1.msra.mxu0 %v1280
        %1349 = vmatprep.subr.mxu0 0.0
        %1350 = vmatpush1.msra.mxu0 %v1279
        %1351 = vmatprep.subr.mxu0 0.0
        %1352 = vmatpush1.msra.mxu0 %v1278
        %1353 = vmatprep.subr.mxu0 0.0
        %1354 = vmatpush1.msra.mxu0 %v1277
        %1355 = vmatprep.subr.mxu0 0.0
        %1356 = vmatpush2.msra.mxu0 0.0
        %1357 = vmatprep.subr.mxu0 0.0
        %1358 = vmatpush2.msra.mxu0 0.0
        %1359 = vmatprep.subr.mxu0 0.0
        %1360 = vmatpush2.msra.mxu0 0.0
        %1361 = vmatprep.subr.mxu0 0.0
        %1362 = vmatpush2.msra.mxu0 0.0
        %1363 = vmatprep.subr.mxu0 0.0
        %1364 = vmatpush2.msra.mxu0 0.0
        %1365 = vmatprep.subr.mxu0 0.0
        %1366 = vmatpush2.msra.mxu0 0.0
        %1367 = vmatprep.subr.mxu0 0.0
        %1368 = vmatpush2.msra.mxu0 0.0
        %1369 = vmatprep.subr.mxu0 0.0
        %1370 = vmatpush2.msra.mxu0 0.0
        %1371 = vmatprep.subr.mxu0 0.0
        %1372 = vmatpush2.msra.mxu0 0.0
        %1373 = vmatprep.subr.mxu0 0.0
        %1374 = vmatpush2.msra.mxu0 0.0
        %1375 = vmatprep.subr.mxu0 0.0
        %1376 = vmatpush2.msra.mxu0 0.0
        %1377 = vmatprep.subr.mxu0 0.0
        %1378 = vmatpush2.msra.mxu0 0.0
        %1379 = vmatprep.subr.mxu0 0.0
        %1380 = vmatpush2.msra.mxu0 0.0
        %1381 = vmatprep.subr.mxu0 0.0
        %1382 = vmatpush2.msra.mxu0 0.0
        %1383 = vmatprep.subr.mxu0 0.0
        %1384 = vmatpush2.msra.mxu0 0.0
        %1385 = vmatprep.subr.mxu0 0.0
        %1386 = vmatpush2.msra.mxu0 0.0
        %1387 = vmatprep.mubr.f32.mxu0 0.0
        %1388 = vmatmul.mubr.f32.gmra.mxu0 %v1321
        %v1389 = vpop.f32.mrf.mxu0
        %v1390 = vadd.f32 %v1298, %v1389
        %v1391 = vpop.f32.mrf.mxu0
        %1392 = vdwg.mxu0
        %vm1393 = vcmask 64512
        %1394 = vst.msk [vmem:[%s269] sm:$0xff] %vm1393, %v1390
        %p1395 = scmp.lt.s32.totalorder %s18, 1
        %s1396 = scalar_select %p1395, %s18, 1
        %s1397 = smul.addr %s1396, 8
        %s1398 = scalar_lea.vmem %s6, %s1397
        // Predicated region
        $region49: #{tpu_custom_call.1} parent=43 // pred_check
          %p1399 = pneg %p167
        $region50: #{tpu_custom_call.1} parent=43 // pred_check_branch
          %1401 = sbr.rel (%p1399) target = $region52
        $region51: #{tpu_custom_call.1} parent=43 // pred_region
          _
        $region52: #{tpu_custom_call.1} parent=43 // pred_fallthru
          _
      $region44: #{tpu_custom_call.1} parent=5 // pred_fallthru
        _
      %p1402 = scmp.le.s32.totalorder 2, %s13
      // Predicated region
      $region53: #{tpu_custom_call.1} parent=5 // pred_check
        %p1403 = pneg %p1402
      $region54: #{tpu_custom_call.1} parent=5 // pred_check_branch
        %1405 = sbr.rel (%p1403) target = $region56
      $region55: #{tpu_custom_call.1} parent=5 // pred_region
        %s1406 = ssub.s32 %s13, 2
        // Predicated region
        $region57: #{tpu_custom_call.1} parent=55 // pred_check
          %p1407 = pneg %p173
        $region58: #{tpu_custom_call.1} parent=55 // pred_check_branch
          %1409 = sbr.rel (%p1407) target = $region60
        $region59: #{tpu_custom_call.1} parent=55 // pred_region
          %p1410 = scmp.lt.s32.totalorder %s19, 1
          %s1411 = scalar_select %p1410, %s19, 1
          %s1412 = smul.addr %s1411, 8
          %s1413 = scalar_lea.vmem %s6, %s1412
        $region60: #{tpu_custom_call.1} parent=55 // pred_fallthru
          _
      $region56: #{tpu_custom_call.1} parent=5 // pred_fallthru
        _
    $region6: #{tpu_custom_call.1} parent=1 // loop_footer
      %s17 = sadd.s32 1, %s13
    $region7: #{tpu_custom_call.1} parent=1 // loop_footer_branch
      %12 = sbr.rel target = $region3
    $region8: #{tpu_custom_call.1} parent=1 // loop_exit
      _
    %1414 = vsyncpa [#allocation3], 1
    %s1415 = scalar_lea.sflag [#allocation3], 1
    %1416 = vsyncpa %s1415, 1

</llo_original>
